<compile_context>
chip_gen: v7x
topology: tpu7x:2x2x1
jax: 0.10.0
libtpu: 0.0.40
codegen_flags: <defaults>
</compile_context>

<pallas_src>
import jax
import jax.numpy as jnp
from jax.experimental import pallas as pl
from jax.experimental.pallas import tpu as pltpu


def _round_up(x, m):
    return (x + m - 1) // m * m


def _cdiv(a, b):
    return (a + b - 1) // b


_VMEM_CAP = 48 * 1024 * 1024        # conservative fitting cap (v7x: 64 MiB/TC)
_VMEM_LIMIT_CAP = 56 * 1024 * 1024  # declared limit cap, leaves compiler headroom


def _vmem_need(ts, th, Dp, Fp, out_bytes, n_h):
    """Per-step resident VMEM estimate for the chosen tiling."""
    wbuf = 1 if n_h == 1 else 2                    # Buffered(1) only when grid-invariant
    need = 0
    need += 2 * ts * Dp * 2                        # x tile (bf16), double-buffered
    need += 2 * ts * Fp * out_bytes                # out tile, double-buffered
    need += wbuf * (Dp * th * 2 + th * 4 + th * Fp * 2)   # w1 / b1 / w2 blocks
    need += Fp * 4                                 # b2 (single-buffered)
    need += ts * Fp * 4                            # f32 accumulator scratch
    need += ts * th * 4 + ts * th * 2              # h (f32) + bf16 recast
    need += ts * Fp * 4                            # epilogue temporaries (mask/where)
    return need


def _encoder_kernel(len_ref, x_ref, w1_ref, b1_ref, w2_ref, b2_ref, o_ref, acc_ref):
    # len_ref : (B,)  int32 in SMEM (scalar prefetch)
    # x_ref   : (1, ts, Dp) bf16  gathered embeddings for this (batch, seq-tile)
    # w1_ref  : (Dp, th) bf16      b1_ref : (1, th) f32
    # w2_ref  : (th, Fp) bf16      b2_ref : (1, Fp) f32
    # o_ref   : (1, ts, Fp) out_dtype
    # acc_ref : (ts, Fp) f32 scratch, resident across the H-reduction axis
    b = pl.program_id(0)
    sj = pl.program_id(1)
    k = pl.program_id(2)
    ts = x_ref.shape[1]

    @pl.when(k == 0)
    def _():
        acc_ref[...] = jnp.zeros_like(acc_ref)

    # MXU matmuls with f32 accumulation; elementwise epilogue in f32 (v5e-safe).
    x = x_ref[0]                                                       # (ts, Dp) bf16
    h = jnp.dot(x, w1_ref[...], preferred_element_type=jnp.float32) + b1_ref[...]
    h = jnp.maximum(h, 0.0)                                            # (ts, th) f32
    acc_ref[...] += jnp.dot(h.astype(w2_ref.dtype), w2_ref[...],
                            preferred_element_type=jnp.float32)        # (ts, Fp) f32

    @pl.when(k == pl.num_programs(2) - 1)
    def _():
        y = acc_ref[...] + b2_ref[...]
        # Validity mask built in-kernel from the SMEM length (no mask DMA stream).
        pos = sj * ts + jax.lax.broadcasted_iota(jnp.int32, (ts, 1), 0)
        valid = pos < len_ref[b]
        o_ref[0] = jnp.where(valid, y, 0.0).astype(o_ref.dtype)


def prepare_params(params):
    """One-time prep: zero-pad feature dims to multiples of 128 (lane-dense),
    cast matmul operands to bf16, and keep a (V, Dp) bf16 embedding table.
    Call once; reuse the result across forward calls (no per-call pad/cast)."""
    embed, w1, b1, w2, b2 = (params["embed"], params["w1"], params["b1"],
                             params["w2"], params["b2"])
    V, D = embed.shape
    H = w1.shape[1]
    F = w2.shape[1]
    Dp, Hp, Fp = _round_up(D, 128), _round_up(H, 128), _round_up(F, 128)
    # TODO(synk): int8 (v6e MXU) / fp8 (v7x MXU) weight quantization with
    # dequant scales applied in the f32 epilogue would further halve weight
    # traffic; kept bf16 here for cross-generation correctness.
    return {
        "dims": (D, H, F, Dp, Hp, Fp),
        "embed_p": jnp.pad(embed, ((0, 0), (0, Dp - D))).astype(jnp.bfloat16),
        "w1p": jnp.pad(w1, ((0, Dp - D), (0, Hp - H))).astype(jnp.bfloat16),
        "b1p": jnp.pad(b1, ((0, 0), (0, Hp - H))).astype(jnp.float32),
        "w2p": jnp.pad(w2, ((0, Hp - H), (0, Fp - F))).astype(jnp.float32).astype(jnp.float32).astype(jnp.bfloat16) if False else jnp.pad(w2, ((0, Hp - H), (0, Fp - F))).astype(jnp.bfloat16),
        "b2p": jnp.pad(b2, ((0, 0), (0, Fp - F))).astype(jnp.float32),
    }


def fairseq_encoder_model_forward(src_tokens, src_lengths, prepared, *,
                                  ts=None, out_dtype=jnp.float32):
    """Encoder-only forward. Returns features of shape (batch, src_len, features).

    `prepared` is the output of prepare_params (padded/cast weights + table)."""
    D, H, F, Dp, Hp, Fp = prepared["dims"]
    B, S = src_tokens.shape
    out_bytes = jnp.dtype(out_dtype).itemsize

    # ---- sequence tile: large to amortize ~0.35us/step grid overhead ----
    if ts is None:
        ts = 512 if S >= 512 else _round_up(S, 8)
        if B == 1 and S >= 16:
            # v7x megacore: with a single batch, keep >= 2 parallel seq tiles.
            ts = min(ts, max(8, _round_up(_cdiv(S, 2), 8)))
    Sp = _round_up(S, ts)
    n_sj = Sp // ts

    # ---- hidden tile: split H only when the one-tile footprint blows VMEM ----
    def pick_th(ts_):
        m = Hp // 128
        for d in sorted((d for d in range(1, m + 1) if m % d == 0), reverse=True):
            th_ = 128 * d
            if _vmem_need(ts_, th_, Dp, Fp, out_bytes, Hp // th_) <= _VMEM_CAP:
                return th_, True
        return 128, False

    th, ok = pick_th(ts)
    if not ok and ts > 64:
        ts = 64 if S >= 64 else _round_up(S, 8)
        Sp = _round_up(S, ts)
        n_sj = Sp // ts
        th, _ = pick_th(ts)
    n_h = Hp // th

    # ---- per-call activation prep: bf16 gather from the pre-padded table ----
    x = jnp.take(prepared["embed_p"], src_tokens.astype(jnp.int32), axis=0)  # (B,S,Dp) bf16
    if Sp != S:
        x = jnp.pad(x, ((0, 0), (0, Sp - S), (0, 0)))
    lens = src_lengths.astype(jnp.int32)                                      # (B,) -> SMEM

    need = _vmem_need(ts, th, Dp, Fp, out_bytes, n_h)
    vmem_limit = int(min(_VMEM_LIMIT_CAP, need + 8 * 1024 * 1024))

    cost = pl.CostEstimate(
        flops=int(2 * B * Sp * (Dp * Hp + Hp * Fp)),
        transcendentals=0,
        bytes_accessed=int(B * Sp * Dp * 2 + Dp * Hp * 2 + Hp * Fp * 2
                           + Hp * 4 + Fp * 4 + B * Sp * Fp * out_bytes + B * 4),
    )

    def build_and_call(single_buffer_const):
        def const_spec(shape, index_map):
            if single_buffer_const:
                # Grid-invariant block: single-buffer to halve resident VMEM.
                return pl.BlockSpec(shape, index_map, pipeline_mode=pl.Buffered(1))
            return pl.BlockSpec(shape, index_map)

        if n_h == 1:
            w1_spec = const_spec((Dp, th), lambda b, sj, k, lens: (0, 0))
            b1_spec = const_spec((1, th), lambda b, sj, k, lens: (0, 0))
            w2_spec = const_spec((th, Fp), lambda b, sj, k, lens: (0, 0))
        else:
            # Blocks vary along the H-reduction axis: keep default double-buffering.
            w1_spec = pl.BlockSpec((Dp, th), lambda b, sj, k, lens: (0, k))
            b1_spec = pl.BlockSpec((1, th), lambda b, sj, k, lens: (0, k))
            w2_spec = pl.BlockSpec((th, Fp), lambda b, sj, k, lens: (k, 0))
        b2_spec = const_spec((1, Fp), lambda b, sj, k, lens: (0, 0))

        return pl.pallas_call(
            _encoder_kernel,
            out_shape=jax.ShapeDtypeStruct((B, Sp, Fp), out_dtype),
            grid_spec=pltpu.PrefetchScalarGridSpec(
                num_scalar_prefetch=1,                       # src_lengths -> SMEM
                grid=(B, n_sj, n_h),
                in_specs=[
                    pl.BlockSpec((1, ts, Dp), lambda b, sj, k, lens: (b, sj, 0)),  # x
                    w1_spec, b1_spec, w2_spec, b2_spec,
                ],
                out_specs=pl.BlockSpec((1, ts, Fp), lambda b, sj, k, lens: (b, sj, 0)),
                scratch_shapes=[pltpu.VMEM((ts, Fp), jnp.float32)],
            ),
            compiler_params=pltpu.CompilerParams(
                dimension_semantics=("parallel", "parallel", "arbitrary"),
                vmem_limit_bytes=vmem_limit),
            cost_estimate=cost,
        )(lens, x, prepared["w1p"], prepared["b1p"], prepared["w2p"], prepared["b2p"])

    # Feature-detect single-buffered constant blocks; fall back cleanly if the
    # running jax rejects pipeline_mode / Buffered(1).
    try:
        out_padded = build_and_call(True)
    except (TypeError, AttributeError, NotImplementedError):
        out_padded = build_and_call(False)

    # TODO(synk): for tiny per-batch S, flatten (B, Sp) into one rows axis so
    # tiles fill full 256-row MXU passes (needs a per-row batch-index mask).
    return out_padded[:, :S, :F]


def init_params(key, vocab, embed_dim, hidden, features):
    """Deterministic synthetic parameter init (shapes implied by the module)."""
    k1, k2, k3 = jax.random.split(key, 3)
    scale_e = 1.0 / jnp.sqrt(embed_dim)
    scale_1 = 1.0 / jnp.sqrt(embed_dim)
    scale_2 = 1.0 / jnp.sqrt(hidden)
    return {
        "embed": jax.random.normal(k1, (vocab, embed_dim), jnp.float32) * scale_e,
        "w1": jax.random.normal(k2, (embed_dim, hidden), jnp.float32) * scale_1,
        "b1": jnp.zeros((1, hidden), jnp.float32),
        "w2": jax.random.normal(k3, (hidden, features), jnp.float32) * scale_2,
        "b2": jnp.zeros((1, features), jnp.float32),
    }


if __name__ == "__main__":
    # Small shapes consistent with the module: (batch, src_len) token input.
    B, S = 2, 8
    VOCAB, D, H, FEAT = 16, 32, 64, 32

    key = jax.random.PRNGKey(0)
    k_tok, k_par = jax.random.split(key)

    src_tokens = jax.random.randint(k_tok, (B, S), 0, VOCAB, dtype=jnp.int32)
    src_lengths = jnp.array([8, 5], dtype=jnp.int32)
    params = init_params(k_par, VOCAB, D, H, FEAT)

    prepared = prepare_params(params)   # one-time weight/table pad + bf16 cast
    out = fairseq_encoder_model_forward(src_tokens, src_lengths, prepared)
    jax.block_until_ready(out)

    assert out.shape == (B, S, FEAT)
    # Padded positions must be exactly zero.
    assert bool(jnp.all(out[1, 5:, :] == 0.0))

    # Pure-JAX reference (f32) — loose tolerance because matmul inputs are bf16.
    x_ref = jnp.take(params["embed"], src_tokens, axis=0)
    h_ref = jnp.maximum(x_ref @ params["w1"] + params["b1"], 0.0)
    y_ref = h_ref @ params["w2"] + params["b2"]
    mask = (jnp.arange(S)[None, :] < src_lengths[:, None])[..., None]
    y_ref = jnp.where(mask, y_ref, 0.0)
    assert bool(jnp.allclose(out, y_ref, atol=1e-1, rtol=1e-1))

    # TODO(synk): get_normalized_probs (softmax over last dim) is a separate
    # inference helper on the base class, not part of forward; not kernelized.
    print("KERNEL_OK")
</pallas_src>

<mosaic_0001>
module attributes {stable_mosaic.version = 11 : i64} {
  func.func @_encoder_kernel(%arg0: i32, %arg1: i32, %arg2: i32, %arg3: memref<2xi32, #tpu.memory_space<smem>>, %arg4: memref<1x8x128xbf16, #tpu.memory_space<vmem>>, %arg5: memref<128x128xbf16, #tpu.memory_space<vmem>>, %arg6: memref<1x128xf32, #tpu.memory_space<vmem>>, %arg7: memref<128x128xbf16, #tpu.memory_space<vmem>>, %arg8: memref<1x128xf32, #tpu.memory_space<vmem>>, %arg9: memref<1x8x128xf32, #tpu.memory_space<vmem>>, %arg10: memref<8x128xf32, #tpu.memory_space<vmem>>) attributes {dimension_semantics = [#tpu.dimension_semantics<parallel>, #tpu.dimension_semantics<parallel>, #tpu.dimension_semantics<arbitrary>], iteration_bounds = array<i64: 2, 1, 1>, scalar_prefetch = 1 : i64, scratch_operands = 1 : i64, tpu.core_type = #tpu.core_type<tc>, window_params = [{transform_indices = @transform_0, window_bounds = array<i64: 1, 8, 128>}, {pipeline_mode = #tpu.pipeline_mode<synchronous>, transform_indices = @transform_1, window_bounds = array<i64: 128, 128>}, {pipeline_mode = #tpu.pipeline_mode<synchronous>, transform_indices = @transform_2, window_bounds = array<i64: 1, 128>}, {pipeline_mode = #tpu.pipeline_mode<synchronous>, transform_indices = @transform_3, window_bounds = array<i64: 128, 128>}, {pipeline_mode = #tpu.pipeline_mode<synchronous>, transform_indices = @transform_4, window_bounds = array<i64: 1, 128>}, {transform_indices = @transform_5, window_bounds = array<i64: 1, 8, 128>}]} {
    %c0_i32 = arith.constant 0 : i32
    %0 = arith.cmpi eq, %arg2, %c0_i32 : i32
    %1 = arith.extui %0 : i1 to i32
    %c0_i32_0 = arith.constant 0 : i32
    %2 = arith.cmpi ne, %1, %c0_i32_0 : i32
    scf.if %2 {
      %cst_17 = arith.constant 0.000000e+00 : f32
      %21 = vector.broadcast %cst_17 : f32 to vector<8x128xf32>
      %c0_18 = arith.constant 0 : index
      %c0_19 = arith.constant 0 : index
      %22 = vector.load %arg10[%c0_18, %c0_19] : memref<8x128xf32, #tpu.memory_space<vmem>>, vector<8x128xf32>
      tpu.vector_store %arg10[%c0_18, %c0_19], %21 {strides = array<i32>} : memref<8x128xf32, #tpu.memory_space<vmem>>, vector<8x128xf32>,
    } else {
    }
    %c0 = arith.constant 0 : index
    %c0_1 = arith.constant 0 : index
    %c0_2 = arith.constant 0 : index
    %3 = vector.load %arg4[%c0, %c0_1, %c0_2] : memref<1x8x128xbf16, #tpu.memory_space<vmem>>, vector<1x8x128xbf16>
    %4 = vector.shape_cast %3 : vector<1x8x128xbf16> to vector<8x128xbf16>
    %c0_3 = arith.constant 0 : index
    %c0_4 = arith.constant 0 : index
    %5 = vector.load %arg5[%c0_3, %c0_4] : memref<128x128xbf16, #tpu.memory_space<vmem>>, vector<128x128xbf16>
    %cst = arith.constant dense<0.000000e+00> : vector<8x128xf32>
    %6 = tpu.matmul %4, %5, %cst {dimension_numbers = #tpu.dot_dimension_numbers<[1], [0], [0], [1], [0, 0, 1, 1], [], []>} : vector<8x128xbf16>, vector<128x128xbf16>, vector<8x128xf32> -> vector<8x128xf32>
    %c0_5 = arith.constant 0 : index
    %c0_6 = arith.constant 0 : index
    %7 = vector.load %arg6[%c0_5, %c0_6] : memref<1x128xf32, #tpu.memory_space<vmem>>, vector<1x128xf32>
    %8 = vector.broadcast %7 : vector<1x128xf32> to vector<8x128xf32>
    %9 = arith.addf %6, %8 : vector<8x128xf32>
    %cst_7 = arith.constant 0.000000e+00 : f32
    %10 = vector.broadcast %cst_7 : f32 to vector<8x128xf32>
    %11 = arith.maximumf %9, %10 : vector<8x128xf32>
    %c0_8 = arith.constant 0 : index
    %c0_9 = arith.constant 0 : index
    %12 = vector.load %arg10[%c0_8, %c0_9] : memref<8x128xf32, #tpu.memory_space<vmem>>, vector<8x128xf32>
    %13 = arith.truncf %11 : vector<8x128xf32> to vector<8x128xbf16>
    %c0_10 = arith.constant 0 : index
    %c0_11 = arith.constant 0 : index
    %14 = vector.load %arg7[%c0_10, %c0_11] : memref<128x128xbf16, #tpu.memory_space<vmem>>, vector<128x128xbf16>
    %cst_12 = arith.constant dense<0.000000e+00> : vector<8x128xf32>
    %15 = tpu.matmul %13, %14, %cst_12 {dimension_numbers = #tpu.dot_dimension_numbers<[1], [0], [0], [1], [0, 0, 1, 1], [], []>} : vector<8x128xbf16>, vector<128x128xbf16>, vector<8x128xf32> -> vector<8x128xf32>
    %16 = arith.addf %12, %15 : vector<8x128xf32>
    %c0_13 = arith.constant 0 : index
    %c0_14 = arith.constant 0 : index
    %17 = vector.load %arg10[%c0_13, %c0_14] : memref<8x128xf32, #tpu.memory_space<vmem>>, vector<8x128xf32>
    tpu.vector_store %arg10[%c0_13, %c0_14], %16 {strides = array<i32>} : memref<8x128xf32, #tpu.memory_space<vmem>>, vector<8x128xf32>,
    %c0_i32_15 = arith.constant 0 : i32
    %18 = arith.cmpi eq, %arg2, %c0_i32_15 : i32
    %19 = arith.extui %18 : i1 to i32
    %c0_i32_16 = arith.constant 0 : i32
    %20 = arith.cmpi ne, %19, %c0_i32_16 : i32
    scf.if %20 {
      %c0_17 = arith.constant 0 : index
      %c0_18 = arith.constant 0 : index
      %21 = vector.load %arg10[%c0_17, %c0_18] : memref<8x128xf32, #tpu.memory_space<vmem>>, vector<8x128xf32>
      %c0_19 = arith.constant 0 : index
      %c0_20 = arith.constant 0 : index
      %22 = vector.load %arg8[%c0_19, %c0_20] : memref<1x128xf32, #tpu.memory_space<vmem>>, vector<1x128xf32>
      %23 = vector.broadcast %22 : vector<1x128xf32> to vector<8x128xf32>
      %24 = arith.addf %21, %23 : vector<8x128xf32>
      %c8_i32 = arith.constant 8 : i32
      %25 = arith.muli %arg1, %c8_i32 : i32
      %26 = tpu.iota {dimensions = array<i32: 0>} : vector<8x1xi32>
      %27 = vector.broadcast %25 : i32 to vector<8x1xi32>
      %28 = arith.addi %27, %26 : vector<8x1xi32>
      %29 = arith.index_cast %arg0 : i32 to index
      %30 = memref.load %arg3[%29] : memref<2xi32, #tpu.memory_space<smem>>
      %31 = vector.broadcast %30 : i32 to vector<8x1xi32>
      %32 = arith.cmpi slt, %28, %31 : vector<8x1xi32>
      %cst_21 = arith.constant 0.000000e+00 : f32
      %33 = vector.shape_cast %32 : vector<8x1xi1> to vector<8x1xi1>
      %34 = vector.broadcast %33 : vector<8x1xi1> to vector<8x128xi1>
      %35 = vector.broadcast %cst_21 : f32 to vector<8x128xf32>
      %36 = arith.select %34, %24, %35 : vector<8x128xi1>, vector<8x128xf32>
      %c0_22 = arith.constant 0 : index
      %c0_23 = arith.constant 0 : index
      %c0_24 = arith.constant 0 : index
      %37 = vector.load %arg9[%c0_22, %c0_23, %c0_24] : memref<1x8x128xf32, #tpu.memory_space<vmem>>, vector<1x8x128xf32>
      %38 = vector.shape_cast %37 : vector<1x8x128xf32> to vector<8x128xf32>
      %39 = vector.shape_cast %36 : vector<8x128xf32> to vector<1x8x128xf32>
      tpu.vector_store %arg9[%c0_22, %c0_23, %c0_24], %39 {strides = array<i32>} : memref<1x8x128xf32, #tpu.memory_space<vmem>>, vector<1x8x128xf32>,
    } else {
    }
    return
  }
  func.func @transform_0(%arg0: i32, %arg1: i32, %arg2: i32, %arg3: memref<2xi32, #tpu.memory_space<smem>>) -> (i32, i32, i32) {
    %c0_i32 = arith.constant 0 : i32
    %c0_i32_0 = arith.constant 0 : i32
    return %arg0, %arg1, %c0_i32 : i32, i32, i32
  }
  func.func @transform_1(%arg0: i32, %arg1: i32, %arg2: i32, %arg3: memref<2xi32, #tpu.memory_space<smem>>) -> (i32, i32) {
    %c0_i32 = arith.constant 0 : i32
    %c0_i32_0 = arith.constant 0 : i32
    %c0_i32_1 = arith.constant 0 : i32
    return %c0_i32, %c0_i32_0 : i32, i32
  }
  func.func @transform_2(%arg0: i32, %arg1: i32, %arg2: i32, %arg3: memref<2xi32, #tpu.memory_space<smem>>) -> (i32, i32) {
    %c0_i32 = arith.constant 0 : i32
    %c0_i32_0 = arith.constant 0 : i32
    %c0_i32_1 = arith.constant 0 : i32
    return %c0_i32, %c0_i32_0 : i32, i32
  }
  func.func @transform_3(%arg0: i32, %arg1: i32, %arg2: i32, %arg3: memref<2xi32, #tpu.memory_space<smem>>) -> (i32, i32) {
    %c0_i32 = arith.constant 0 : i32
    %c0_i32_0 = arith.constant 0 : i32
    %c0_i32_1 = arith.constant 0 : i32
    return %c0_i32, %c0_i32_0 : i32, i32
  }
  func.func @transform_4(%arg0: i32, %arg1: i32, %arg2: i32, %arg3: memref<2xi32, #tpu.memory_space<smem>>) -> (i32, i32) {
    %c0_i32 = arith.constant 0 : i32
    %c0_i32_0 = arith.constant 0 : i32
    %c0_i32_1 = arith.constant 0 : i32
    return %c0_i32, %c0_i32_0 : i32, i32
  }
  func.func @transform_5(%arg0: i32, %arg1: i32, %arg2: i32, %arg3: memref<2xi32, #tpu.memory_space<smem>>) -> (i32, i32, i32) {
    %c0_i32 = arith.constant 0 : i32
    %c0_i32_0 = arith.constant 0 : i32
    return %arg0, %arg1, %c0_i32 : i32, i32, i32
  }
}

</mosaic_0001>

<llo_original>
// kernel: tpu_custom_call.1
$region0: #{tpu_custom_call.1}
  #allocation0 [shape = 'u32[]', space=smem, size = 0x4, offset = 0x4, fixed_abs, tag = 'smem constant byte address 0x4 - core index']
  #allocation1 [shape = 'u32[144,128]{1,0:T(1,128)}', space=vmem, size = 0x12000, scoped, tag = 'internal scratch']
  #allocation2 [shape = 'f32[8,128]{1,0:T(8,128)}', space=vmem, size = 0x1000, scoped, tag = 'scratch operand']
  #allocation3 [shape = 's32[1]{0}', space=sflag, size = 0x4, scoped, tag = 'scoped memory for tpu_custom_call.1']
  #allocation4 [shape = 'u8[512]{0}', space=smem, size = 0x200, scoped, tag = 'prefetched SMEM operand 0']
  %s0 = inlined_call_operand.hbm [shape: s32[2], index: 0, kind: input, shape index: {}]
  %s1 = inlined_call_operand.hbm [shape: bf16[2,8,128], index: 1, kind: input, shape index: {}]
  %s2 = inlined_call_operand.hbm [shape: bf16[128,128], index: 2, kind: input, shape index: {}]
  %s3 = inlined_call_operand.vmem [shape: f32[1,128], index: 3, kind: input, shape index: {}]
  %s4 = inlined_call_operand.hbm [shape: bf16[128,128], index: 4, kind: input, shape index: {}]
  %s5 = inlined_call_operand.vmem [shape: f32[1,128], index: 5, kind: input, shape index: {}]
  %s6 = inlined_call_operand.hbm [shape: f32[2,8,128], index: 6, kind: output, shape index: {}]
  %s7 = sld [smem:[#allocation0]]
  $region73: #{tpu_custom_call.1} parent=0
    _
  %s9 = ssub.s32 1, %s7
  %s10 = scalar_select 0, %s9, %s7
  %12 = dma.hbm_to_smem %s0, 16, [#allocation4], [#allocation3]
  %13 = dma.done [#allocation3], 16
  %14 = sfence
  $region1: #{tpu_custom_call.1} parent=0
    #allocation5 [shape = 'u8[4096]{0}', space=vmem, size = 0x1000, scoped, tag = 'input window, operand 1']
    #allocation6 [shape = 's32[2]{0}', space=sflag, size = 0x8, scoped, tag = 'scoped memory for tpu_custom_call.1']
    #allocation7 [shape = 's32[2]{0}', space=sflag, size = 0x8, scoped, tag = 'scoped memory for tpu_custom_call.1']
    #allocation8 [shape = 'u8[32768]{0}', space=vmem, size = 0x8000, scoped, tag = 'input window, operand 2, single buffered']
    #allocation9 [shape = 's32[1]{0}', space=sflag, size = 0x4, scoped, tag = 'scoped memory for tpu_custom_call.1']
    #allocation10 [shape = 'u8[32768]{0}', space=vmem, size = 0x8000, scoped, tag = 'input window, operand 4, single buffered']
    #allocation11 [shape = 'u8[8192]{0}', space=vmem, size = 0x2000, scoped, tag = 'output window, operand 0']
    %15 = vsyncpa [#allocation6], 0
    %s16 = scalar_lea.sflag [#allocation6], 1
    %17 = vsyncpa %s16, 0
    %18 = vsyncpa [#allocation9], 0
    %19 = vsyncpa [#allocation7], 0
    %s20 = scalar_lea.sflag [#allocation7], 1
    %21 = vsyncpa %s20, 0
    loop: start=0, step=1, limit=4
    $region2: #{tpu_custom_call.1} parent=1 // loop_pre_header
      _
    $region3: #{tpu_custom_call.1} parent=1 // loop_header
      %s23 = sphi 0, %s27
      %p24 = scmp.ge.s32.totalorder %s23, 4
      %s30 = sphi 0, %s49
      %s31 = sphi 0, %s45
      %s32 = sphi 0, %s41
      %s33 = sphi 0, %s30
      %s34 = sphi 0, %s31
      %s35 = sphi 0, %s32
      %s36 = sphi 0, %s33
      %s37 = sphi 0, %s34
      %s38 = sphi 0, %s35
      %s54 = sphi 0, %s56
      %s57 = sphi 0, %s54
      %s58 = sphi 0, %s57
      %s74 = sphi 0, %s58
      %s78 = sphi 0, %s78
      %s80 = sphi 0, %s78
      %s81 = sphi 0, %s80
      %s95 = sphi 0, %s81
      %s99 = sphi 0, %s99
      %s101 = sphi 0, %s99
      %s102 = sphi 0, %s101
      %s116 = sphi 0, %s102
      %s120 = sphi 0, %s120
      %s122 = sphi 0, %s120
      %s123 = sphi 0, %s122
      %s137 = sphi 0, %s123
      %s141 = sphi 0, %s141
      %s143 = sphi 0, %s141
      %s144 = sphi 0, %s143
      %s158 = sphi 0, %s144
      %s166 = sphi 0, %s168
      %s169 = sphi 0, %s166
      %s170 = sphi 0, %s169
      %s186 = sphi 0, %s170
    $region4: #{tpu_custom_call.1} parent=1 // loop_header_branch
      %26 = sbr.rel (%p24) target = $region8
    $region5: #{tpu_custom_call.1} parent=1 // loop_body
      %s28 = ssub.s32 %s23, 1
      %s29 = ssub.s32 %s23, 2
      %s39 = sadd.s32 1, %s32
      %p40 = scmp.ge.s32.totalorder %s39, 1
      %s41 = scalar_select %p40, 0, %s39
      %s42 = sadd.s32 1, %s31
      %s43 = scalar_select %p40, %s42, %s31
      %p44 = scmp.ge.s32.totalorder %s43, 1
      %s45 = scalar_select %p44, 0, %s43
      %s46 = sadd.s32 1, %s30
      %s47 = scalar_select %p44, %s46, %s30
      %p48 = scmp.ge.s32.totalorder %s47, 2
      %s49 = scalar_select %p48, 0, %s47
      %s50 = ssub.s32 %s30, %s49
      %s51 = ssub.s32 %s31, %s45
      %s52 = sor.u32 %s50, %s51
      %p53 = scmp.eq.s32.totalorder %s52, 0
      %s55 = sadd.s32 %s54, 1
      %s56 = scalar_select %p53, %s54, %s55
      %p59 = pneg %p53
      %p60 = scmp.eq.s32.totalorder %s23, 1
      %p61 = por %p59, %p60
      %p62 = scmp.ne.s32.totalorder %s54, %s57
      %p63 = scmp.eq.s32.totalorder %s23, 0
      %p64 = por %p62, %p63
      %p65 = scmp.ne.s32.totalorder %s54, %s57
      %p66 = scmp.eq.s32.totalorder %s28, 1
      %p67 = por %p65, %p66
      %p68 = scmp.ne.s32.totalorder %s57, %s58
      %p69 = scmp.eq.s32.totalorder %s28, 0
      %p70 = por %p68, %p69
      %p71 = scmp.ne.s32.totalorder %s57, %s58
      %p72 = scmp.eq.s32.totalorder %s29, 1
      %p73 = por %p71, %p72
      %p75 = scmp.ne.s32.totalorder %s58, %s74
      %p76 = scmp.eq.s32.totalorder %s29, 0
      %p77 = por %p75, %p76
      %s79 = sadd.s32 %s78, 1
      %p82 = scmp.eq.s32.totalorder %s23, 1
      %p83 = scmp.ne.s32.totalorder %s78, %s80
      %p84 = scmp.eq.s32.totalorder %s23, 0
      %p85 = por %p83, %p84
      %p86 = scmp.ne.s32.totalorder %s78, %s80
      %p87 = scmp.eq.s32.totalorder %s28, 1
      %p88 = por %p86, %p87
      %p89 = scmp.ne.s32.totalorder %s80, %s81
      %p90 = scmp.eq.s32.totalorder %s28, 0
      %p91 = por %p89, %p90
      %p92 = scmp.ne.s32.totalorder %s80, %s81
      %p93 = scmp.eq.s32.totalorder %s29, 1
      %p94 = por %p92, %p93
      %p96 = scmp.ne.s32.totalorder %s81, %s95
      %p97 = scmp.eq.s32.totalorder %s29, 0
      %p98 = por %p96, %p97
      %s100 = sadd.s32 %s99, 1
      %p103 = scmp.eq.s32.totalorder %s23, 1
      %p104 = scmp.ne.s32.totalorder %s99, %s101
      %p105 = scmp.eq.s32.totalorder %s23, 0
      %p106 = por %p104, %p105
      %p107 = scmp.ne.s32.totalorder %s99, %s101
      %p108 = scmp.eq.s32.totalorder %s28, 1
      %p109 = por %p107, %p108
      %p110 = scmp.ne.s32.totalorder %s101, %s102
      %p111 = scmp.eq.s32.totalorder %s28, 0
      %p112 = por %p110, %p111
      %p113 = scmp.ne.s32.totalorder %s101, %s102
      %p114 = scmp.eq.s32.totalorder %s29, 1
      %p115 = por %p113, %p114
      %p117 = scmp.ne.s32.totalorder %s102, %s116
      %p118 = scmp.eq.s32.totalorder %s29, 0
      %p119 = por %p117, %p118
      %s121 = sadd.s32 %s120, 1
      %p124 = scmp.eq.s32.totalorder %s23, 1
      %p125 = scmp.ne.s32.totalorder %s120, %s122
      %p126 = scmp.eq.s32.totalorder %s23, 0
      %p127 = por %p125, %p126
      %p128 = scmp.ne.s32.totalorder %s120, %s122
      %p129 = scmp.eq.s32.totalorder %s28, 1
      %p130 = por %p128, %p129
      %p131 = scmp.ne.s32.totalorder %s122, %s123
      %p132 = scmp.eq.s32.totalorder %s28, 0
      %p133 = por %p131, %p132
      %p134 = scmp.ne.s32.totalorder %s122, %s123
      %p135 = scmp.eq.s32.totalorder %s29, 1
      %p136 = por %p134, %p135
      %p138 = scmp.ne.s32.totalorder %s123, %s137
      %p139 = scmp.eq.s32.totalorder %s29, 0
      %p140 = por %p138, %p139
      %s142 = sadd.s32 %s141, 1
      %p145 = scmp.eq.s32.totalorder %s23, 1
      %p146 = scmp.ne.s32.totalorder %s141, %s143
      %p147 = scmp.eq.s32.totalorder %s23, 0
      %p148 = por %p146, %p147
      %p149 = scmp.ne.s32.totalorder %s141, %s143
      %p150 = scmp.eq.s32.totalorder %s28, 1
      %p151 = por %p149, %p150
      %p152 = scmp.ne.s32.totalorder %s143, %s144
      %p153 = scmp.eq.s32.totalorder %s28, 0
      %p154 = por %p152, %p153
      %p155 = scmp.ne.s32.totalorder %s143, %s144
      %p156 = scmp.eq.s32.totalorder %s29, 1
      %p157 = por %p155, %p156
      %p159 = scmp.ne.s32.totalorder %s144, %s158
      %p160 = scmp.eq.s32.totalorder %s29, 0
      %p161 = por %p159, %p160
      %s162 = ssub.s32 %s30, %s49
      %s163 = ssub.s32 %s31, %s45
      %s164 = sor.u32 %s162, %s163
      %p165 = scmp.eq.s32.totalorder %s164, 0
      %s167 = sadd.s32 %s166, 1
      %s168 = scalar_select %p165, %s166, %s167
      %p171 = pneg %p165
      %p172 = scmp.eq.s32.totalorder %s23, 1
      %p173 = por %p171, %p172
      %p174 = scmp.ne.s32.totalorder %s166, %s169
      %p175 = scmp.eq.s32.totalorder %s23, 0
      %p176 = por %p174, %p175
      %p177 = scmp.ne.s32.totalorder %s166, %s169
      %p178 = scmp.eq.s32.totalorder %s28, 1
      %p179 = por %p177, %p178
      %p180 = scmp.ne.s32.totalorder %s169, %s170
      %p181 = scmp.eq.s32.totalorder %s28, 0
      %p182 = por %p180, %p181
      %p183 = scmp.ne.s32.totalorder %s169, %s170
      %p184 = scmp.eq.s32.totalorder %s29, 1
      %p185 = por %p183, %p184
      %p187 = scmp.ne.s32.totalorder %s170, %s186
      %p188 = scmp.eq.s32.totalorder %s29, 0
      %p189 = por %p187, %p188
      %p190 = scmp.le.s32.totalorder 1, %s23
      %p191 = scmp.lt.s32.totalorder %s23, 3
      %p192 = pnand %p190, %p191
      %p193 = pneg %p192
      // Predicated region
      $region9: #{tpu_custom_call.1} parent=5 // pred_check
        _
      $region10: #{tpu_custom_call.1} parent=5 // pred_check_branch
        %195 = sbr.rel (%p192) target = $region12
      $region11: #{tpu_custom_call.1} parent=5 // pred_region
        %s196 = ssub.s32 %s23, 1
        // Predicated region
        $region13: #{tpu_custom_call.1} parent=11 // pred_check
          %p197 = pneg %p91
        $region14: #{tpu_custom_call.1} parent=11 // pred_check_branch
          %199 = sbr.rel (%p197) target = $region16
        $region15: #{tpu_custom_call.1} parent=11 // pred_region
          %s201 = ssub.s32 1024, 1024
          %202 = vsyncadd [#allocation9], %s201
          %s203 = sshll.u32 [#allocation8], 4
          %s204 = int_to_ptr.vmem [resolvable:$true] %s203
          %209 = dma.hbm_to_vmem [thread:$0]  %s2, 1024, %s204, [#allocation9], 64, 64, 4
        $region16: #{tpu_custom_call.1} parent=11 // pred_fallthru
          _
        // Predicated region
        $region17: #{tpu_custom_call.1} parent=11 // pred_check
          %p210 = pneg %p112
        $region18: #{tpu_custom_call.1} parent=11 // pred_check_branch
          %212 = sbr.rel (%p210) target = $region20
        $region19: #{tpu_custom_call.1} parent=11 // pred_region
          _
        $region20: #{tpu_custom_call.1} parent=11 // pred_fallthru
          _
        // Predicated region
        $region21: #{tpu_custom_call.1} parent=11 // pred_check
          %p213 = pneg %p133
        $region22: #{tpu_custom_call.1} parent=11 // pred_check_branch
          %215 = sbr.rel (%p213) target = $region24
        $region23: #{tpu_custom_call.1} parent=11 // pred_region
          %s217 = ssub.s32 1024, 1024
          %218 = vsyncadd [#allocation9], %s217
          %s219 = sshll.u32 [#allocation10], 4
          %s220 = int_to_ptr.vmem [resolvable:$true] %s219
          %225 = dma.hbm_to_vmem [thread:$0]  %s4, 1024, %s220, [#allocation9], 64, 64, 4
        $region24: #{tpu_custom_call.1} parent=11 // pred_fallthru
          _
        // Predicated region
        $region25: #{tpu_custom_call.1} parent=11 // pred_check
          %p226 = pneg %p154
        $region26: #{tpu_custom_call.1} parent=11 // pred_check_branch
          %228 = sbr.rel (%p226) target = $region28
        $region27: #{tpu_custom_call.1} parent=11 // pred_region
          _
        $region28: #{tpu_custom_call.1} parent=11 // pred_fallthru
          _
      $region12: #{tpu_custom_call.1} parent=5 // pred_fallthru
        _
      %p229 = scmp.lt.s32.totalorder %s23, 2
      // Predicated region
      $region29: #{tpu_custom_call.1} parent=5 // pred_check
        %p230 = pneg %p229
      $region30: #{tpu_custom_call.1} parent=5 // pred_check_branch
        %232 = sbr.rel (%p230) target = $region32
      $region31: #{tpu_custom_call.1} parent=5 // pred_region
        // Predicated region
        $region33: #{tpu_custom_call.1} parent=31 // pred_check
          %p233 = pneg %p64
        $region34: #{tpu_custom_call.1} parent=31 // pred_check_branch
          %235 = sbr.rel (%p233) target = $region36
        $region35: #{tpu_custom_call.1} parent=31 // pred_region
          %s236 = sand.u32 %s54, 1
          %s237 = scalar_lea.sflag [#allocation6], %s236
          %s238 = sand.u32 %s54, 1
          %s239 = smul.addr %s238, 4
          %s240 = scalar_lea.vmem [#allocation5], %s239
          %s242 = ssub.s32 64, 64
          %243 = vsyncadd %s237, %s242
          %s244 = sadd.s32 %s31, %s30
          %s245 = smul.addr %s244, 64
          %s246 = scalar_lea.hbm %s1, %s245
          %s248 = sshll.u32 %s240, 4
          %s249 = int_to_ptr.vmem [resolvable:$true] %s248
          %251 = dma.hbm_to_vmem [thread:$0]  %s246, 64, %s249, %s237
        $region36: #{tpu_custom_call.1} parent=31 // pred_fallthru
          _
      $region32: #{tpu_custom_call.1} parent=5 // pred_fallthru
        _
      %p252 = scmp.le.s32.totalorder 1, %s23
      %p253 = scmp.lt.s32.totalorder %s23, 3
      %p254 = pnand %p252, %p253
      %p255 = pneg %p254
      // Predicated region
      $region37: #{tpu_custom_call.1} parent=5 // pred_check
        _
      $region38: #{tpu_custom_call.1} parent=5 // pred_check_branch
        %257 = sbr.rel (%p254) target = $region40
      $region39: #{tpu_custom_call.1} parent=5 // pred_region
        %s258 = ssub.s32 %s23, 1
        %s259 = sand.u32 %s57, 1
        %s260 = scalar_lea.sflag [#allocation6], %s259
        %s261 = sand.u32 %s57, 1
        %s262 = smul.addr %s261, 4
        %s263 = scalar_lea.vmem [#allocation5], %s262
        // Predicated region
        $region41: #{tpu_custom_call.1} parent=39 // pred_check
          %p264 = pneg %p70
        $region42: #{tpu_custom_call.1} parent=39 // pred_check_branch
          %266 = sbr.rel (%p264) target = $region44
        $region43: #{tpu_custom_call.1} parent=39 // pred_region
          %267 = dma.done %s260, 64
        $region44: #{tpu_custom_call.1} parent=39 // pred_fallthru
          _
        // Predicated region
        $region45: #{tpu_custom_call.1} parent=39 // pred_check
          %p268 = pneg %p91
        $region46: #{tpu_custom_call.1} parent=39 // pred_check_branch
          %270 = sbr.rel (%p268) target = $region48
        $region47: #{tpu_custom_call.1} parent=39 // pred_region
          %271 = dma.done [#allocation9], 1024
        $region48: #{tpu_custom_call.1} parent=39 // pred_fallthru
          _
        // Predicated region
        $region49: #{tpu_custom_call.1} parent=39 // pred_check
          %p272 = pneg %p133
        $region50: #{tpu_custom_call.1} parent=39 // pred_check_branch
          %274 = sbr.rel (%p272) target = $region52
        $region51: #{tpu_custom_call.1} parent=39 // pred_region
          %275 = dma.done [#allocation9], 1024
        $region52: #{tpu_custom_call.1} parent=39 // pred_fallthru
          _
        %s276 = sand.u32 %s57, 1
        %s277 = scalar_lea.sflag [#allocation6], %s276
        %s278 = sand.u32 %s57, 1
        %s279 = smul.addr %s278, 4
        %s280 = scalar_lea.vmem [#allocation5], %s279
        %p281 = pneg %p70
        %p282 = pneg %p67
        %p283 = pneg %p91
        %p284 = pneg %p88
        %p285 = pneg %p112
        %p286 = pneg %p109
        %p287 = pneg %p133
        %p288 = pneg %p130
        %p289 = pneg %p154
        %p290 = pneg %p151
        %p291 = pneg %p182
        %p292 = pneg %p179
        %s293 = sand.u32 %s169, 1
        %s294 = scalar_lea.sflag [#allocation7], %s293
        %s295 = sand.u32 %s169, 1
        %s296 = smul.addr %s295, 8
        %s297 = scalar_lea.vmem [#allocation11], %s296
        %p299 = scmp.eq.s32.totalorder %s35, 0
        // Predicated region
        $region53: #{tpu_custom_call.1} parent=39 // pred_check
          %p300 = pneg %p299
        $region54: #{tpu_custom_call.1} parent=39 // pred_check_branch
          %302 = sbr.rel (%p300) target = $region56
        $region55: #{tpu_custom_call.1} parent=39 // pred_region
          %303 = vst [vmem:[#allocation2] sm:$0xff] 0.0
        $region56: #{tpu_custom_call.1} parent=39 // pred_fallthru
          _
        %v304 = vld [vmem:[%s263] sm:$0xf]
        %v305 = vld [vmem:[#allocation8] sm:$0xf]
        %v306 = vld [vmem:[#allocation8 + $0x4] sm:$0xf]
        %v307 = vld [vmem:[#allocation8 + $0x8] sm:$0xf]
        %v308 = vld [vmem:[#allocation8 + $0xc] sm:$0xf]
        %v309 = vld [vmem:[#allocation8 + $0x10] sm:$0xf]
        %v310 = vld [vmem:[#allocation8 + $0x14] sm:$0xf]
        %v311 = vld [vmem:[#allocation8 + $0x18] sm:$0xf]
        %v312 = vld [vmem:[#allocation8 + $0x1c] sm:$0xf]
        %v313 = vld [vmem:[#allocation8 + $0x20] sm:$0xf]
        %v314 = vld [vmem:[#allocation8 + $0x24] sm:$0xf]
        %v315 = vld [vmem:[#allocation8 + $0x28] sm:$0xf]
        %v316 = vld [vmem:[#allocation8 + $0x2c] sm:$0xf]
        %v317 = vld [vmem:[#allocation8 + $0x30] sm:$0xf]
        %v318 = vld [vmem:[#allocation8 + $0x34] sm:$0xf]
        %v319 = vld [vmem:[#allocation8 + $0x38] sm:$0xf]
        %v320 = vld [vmem:[#allocation8 + $0x3c] sm:$0xf]
        %v321 = vld [vmem:[%s3] sm:$0x1]
        %v323 = vlaneseq
        %v324 = vshrl.u32 %v323, 7
        %v325 = vsub.s32 0, %v324
        %v326 = vrot.slane %v321, %v325
        %v344 = vunpack.c.l.b16 %v305
        %v345 = vunpack.c.l.b16 %v306
        %v346 = vunpack.c.l.b16 %v307
        %v347 = vunpack.c.l.b16 %v308
        %v348 = vunpack.c.l.b16 %v309
        %v349 = vunpack.c.l.b16 %v310
        %v350 = vunpack.c.l.b16 %v311
        %v351 = vunpack.c.l.b16 %v312
        %v352 = vunpack.c.l.b16 %v313
        %v353 = vunpack.c.l.b16 %v314
        %v354 = vunpack.c.l.b16 %v315
        %v355 = vunpack.c.l.b16 %v316
        %v356 = vunpack.c.l.b16 %v317
        %v357 = vunpack.c.l.b16 %v318
        %v358 = vunpack.c.l.b16 %v319
        %v359 = vunpack.c.l.b16 %v320
        %v360 = vpack.c.b16 %v345, %v344
        %v361 = vpack.c.b16 %v347, %v346
        %v362 = vpack.c.b16 %v349, %v348
        %v363 = vpack.c.b16 %v351, %v350
        %v364 = vpack.c.b16 %v353, %v352
        %v365 = vpack.c.b16 %v355, %v354
        %v366 = vpack.c.b16 %v357, %v356
        %v367 = vpack.c.b16 %v359, %v358
        %376 = vmatprep.subr.bf16.mxu0 0
        %377 = vmatpush1.bf16.msra.mxu0 %v360
        %378 = vmatprep.subr.bf16.mxu0 0
        %379 = vmatpush1.bf16.msra.mxu0 %v361
        %380 = vmatprep.subr.bf16.mxu0 0
        %381 = vmatpush1.bf16.msra.mxu0 %v362
        %382 = vmatprep.subr.bf16.mxu0 0
        %383 = vmatpush1.bf16.msra.mxu0 %v363
        %384 = vmatprep.subr.bf16.mxu0 0
        %385 = vmatpush1.bf16.msra.mxu0 %v364
        %386 = vmatprep.subr.bf16.mxu0 0
        %387 = vmatpush1.bf16.msra.mxu0 %v365
        %388 = vmatprep.subr.bf16.mxu0 0
        %389 = vmatpush1.bf16.msra.mxu0 %v366
        %390 = vmatprep.subr.bf16.mxu0 0
        %391 = vmatpush1.bf16.msra.mxu0 %v367
        %392 = vmatprep.subr.bf16.mxu0 0
        %393 = vmatpush1.bf16.msra.mxu0 0
        %394 = vmatprep.subr.bf16.mxu0 0
        %395 = vmatpush1.bf16.msra.mxu0 0
        %396 = vmatprep.subr.bf16.mxu0 0
        %397 = vmatpush1.bf16.msra.mxu0 0
        %398 = vmatprep.subr.bf16.mxu0 0
        %399 = vmatpush1.bf16.msra.mxu0 0
        %400 = vmatprep.subr.bf16.mxu0 0
        %401 = vmatpush1.bf16.msra.mxu0 0
        %402 = vmatprep.subr.bf16.mxu0 0
        %403 = vmatpush1.bf16.msra.mxu0 0
        %404 = vmatprep.subr.bf16.mxu0 0
        %405 = vmatpush1.bf16.msra.mxu0 0
        %406 = vmatprep.subr.bf16.mxu0 0
        %407 = vmatpush1.bf16.msra.mxu0 0
        %408 = vmatprep.mubr.bf16.mxu0 0
        %409 = vmatmul.mubr.bf16.gmra.mrb[0].mxu0 %v304
        %v410 = vpop.f32.mrb[0].mxu0
        %v411 = vadd.f32 %v326, %v410
        %v412 = vpop.f32.mrb[0].mxu0
        %v413 = vpop.f32.mrb[0].mxu0
        %v414 = vpop.f32.mrb[0].mxu0
        %415 = vdwg.mxu0
        %v416 = vmax.f32 %v411, 0.0
        %v417 = vld [vmem:[#allocation2] sm:$0xff]
        %v418 = vpack.c.bf16 %v416, %v416
        %v419 = vld [vmem:[#allocation10] sm:$0xf]
        %v420 = vld [vmem:[#allocation10 + $0x4] sm:$0xf]
        %v421 = vld [vmem:[#allocation10 + $0x8] sm:$0xf]
        %v422 = vld [vmem:[#allocation10 + $0xc] sm:$0xf]
        %v423 = vld [vmem:[#allocation10 + $0x10] sm:$0xf]
        %v424 = vld [vmem:[#allocation10 + $0x14] sm:$0xf]
        %v425 = vld [vmem:[#allocation10 + $0x18] sm:$0xf]
        %v426 = vld [vmem:[#allocation10 + $0x1c] sm:$0xf]
        %v427 = vld [vmem:[#allocation10 + $0x20] sm:$0xf]
        %v428 = vld [vmem:[#allocation10 + $0x24] sm:$0xf]
        %v429 = vld [vmem:[#allocation10 + $0x28] sm:$0xf]
        %v430 = vld [vmem:[#allocation10 + $0x2c] sm:$0xf]
        %v431 = vld [vmem:[#allocation10 + $0x30] sm:$0xf]
        %v432 = vld [vmem:[#allocation10 + $0x34] sm:$0xf]
        %v433 = vld [vmem:[#allocation10 + $0x38] sm:$0xf]
        %v434 = vld [vmem:[#allocation10 + $0x3c] sm:$0xf]
        %v451 = vunpack.c.l.b16 %v419
        %v452 = vunpack.c.l.b16 %v420
        %v453 = vunpack.c.l.b16 %v421
        %v454 = vunpack.c.l.b16 %v422
        %v455 = vunpack.c.l.b16 %v423
        %v456 = vunpack.c.l.b16 %v424
        %v457 = vunpack.c.l.b16 %v425
        %v458 = vunpack.c.l.b16 %v426
        %v459 = vunpack.c.l.b16 %v427
        %v460 = vunpack.c.l.b16 %v428
        %v461 = vunpack.c.l.b16 %v429
        %v462 = vunpack.c.l.b16 %v430
        %v463 = vunpack.c.l.b16 %v431
        %v464 = vunpack.c.l.b16 %v432
        %v465 = vunpack.c.l.b16 %v433
        %v466 = vunpack.c.l.b16 %v434
        %v467 = vpack.c.b16 %v452, %v451
        %v468 = vpack.c.b16 %v454, %v453
        %v469 = vpack.c.b16 %v456, %v455
        %v470 = vpack.c.b16 %v458, %v457
        %v471 = vpack.c.b16 %v460, %v459
        %v472 = vpack.c.b16 %v462, %v461
        %v473 = vpack.c.b16 %v464, %v463
        %v474 = vpack.c.b16 %v466, %v465
        %483 = vmatprep.subr.bf16.mxu0 0
        %484 = vmatpush1.bf16.msra.mxu0 %v467
        %485 = vmatprep.subr.bf16.mxu0 0
        %486 = vmatpush1.bf16.msra.mxu0 %v468
        %487 = vmatprep.subr.bf16.mxu0 0
        %488 = vmatpush1.bf16.msra.mxu0 %v469
        %489 = vmatprep.subr.bf16.mxu0 0
        %490 = vmatpush1.bf16.msra.mxu0 %v470
        %491 = vmatprep.subr.bf16.mxu0 0
        %492 = vmatpush1.bf16.msra.mxu0 %v471
        %493 = vmatprep.subr.bf16.mxu0 0
        %494 = vmatpush1.bf16.msra.mxu0 %v472
        %495 = vmatprep.subr.bf16.mxu0 0
        %496 = vmatpush1.bf16.msra.mxu0 %v473
        %497 = vmatprep.subr.bf16.mxu0 0
        %498 = vmatpush1.bf16.msra.mxu0 %v474
        %499 = vmatprep.subr.bf16.mxu0 0
        %500 = vmatpush1.bf16.msra.mxu0 0
        %501 = vmatprep.subr.bf16.mxu0 0
        %502 = vmatpush1.bf16.msra.mxu0 0
        %503 = vmatprep.subr.bf16.mxu0 0
        %504 = vmatpush1.bf16.msra.mxu0 0
        %505 = vmatprep.subr.bf16.mxu0 0
        %506 = vmatpush1.bf16.msra.mxu0 0
        %507 = vmatprep.subr.bf16.mxu0 0
        %508 = vmatpush1.bf16.msra.mxu0 0
        %509 = vmatprep.subr.bf16.mxu0 0
        %510 = vmatpush1.bf16.msra.mxu0 0
        %511 = vmatprep.subr.bf16.mxu0 0
        %512 = vmatpush1.bf16.msra.mxu0 0
        %513 = vmatprep.subr.bf16.mxu0 0
        %514 = vmatpush1.bf16.msra.mxu0 0
        %515 = vmatprep.mubr.bf16.mxu0 0
        %516 = vmatmul.mubr.bf16.gmra.mrb[0].mxu0 %v418
        %v517 = vpop.f32.mrb[0].mxu0
        %v518 = vadd.f32 0.0, %v517
        %v519 = vpop.f32.mrb[0].mxu0
        %v520 = vpop.f32.mrb[0].mxu0
        %v521 = vpop.f32.mrb[0].mxu0
        %522 = vdwg.mxu0
        %v523 = vadd.f32 %v417, %v518
        %524 = vst [vmem:[#allocation2] sm:$0xff] %v523
        // Predicated region
        $region57: #{tpu_custom_call.1} parent=39 // pred_check
          %p525 = pneg %p299
        $region58: #{tpu_custom_call.1} parent=39 // pred_check_branch
          %527 = sbr.rel (%p525) target = $region60
        $region59: #{tpu_custom_call.1} parent=39 // pred_region
          %v528 = vld [vmem:[#allocation2] sm:$0xff]
          %v529 = vld [vmem:[%s5] sm:$0x1]
          %v531 = vlaneseq
          %v532 = vshrl.u32 %v531, 7
          %v533 = vsub.s32 0, %v532
          %v534 = vrot.slane %v529, %v533
          %v536 = vadd.f32 %v528, %v534
          %s537 = smul.u32 %s34, 8
          %v538 = vlaneseq
          %v539 = vshrl.u32 %v538, 7
          %v540 = vstv %s537
          %v541 = vadd.s32 %v540, %v539
          %s542 = sld [smem:[#allocation4 + %s33]]
          %v543 = vstv %s542
          %vm544 = vcmp.lt.s32.totalorder %v541, %v543
          %v545 = vsel %vm544, 1, 0
          %vm546 = vcmp.eq.s32.totalorder %v545, 1
          %v547 = vsel %vm546, %v536, 0.0
          %548 = vst [vmem:[%s297] sm:$0xff] %v547
        $region60: #{tpu_custom_call.1} parent=39 // pred_fallthru
          _
        %s549 = sand.u32 %s169, 1
        %s550 = scalar_lea.sflag [#allocation7], %s549
        %s551 = sand.u32 %s169, 1
        %s552 = smul.addr %s551, 8
        %s553 = scalar_lea.vmem [#allocation11], %s552
        // Predicated region
        $region61: #{tpu_custom_call.1} parent=39 // pred_check
          %p554 = pneg %p179
        $region62: #{tpu_custom_call.1} parent=39 // pred_check_branch
          %556 = sbr.rel (%p554) target = $region64
        $region63: #{tpu_custom_call.1} parent=39 // pred_region
          %s558 = ssub.s32 128, 128
          %559 = vsyncadd %s550, %s558
          %s560 = sadd.s32 %s34, %s33
          %s561 = smul.addr %s560, 128
          %s562 = scalar_lea.hbm %s6, %s561
          %s564 = sshll.u32 %s553, 4
          %s565 = int_to_ptr.vmem [resolvable:$true] %s564
          %567 = dma.vmem_to_hbm [thread:$0]  %s565, 128, %s562, %s550
        $region64: #{tpu_custom_call.1} parent=39 // pred_fallthru
          _
      $region40: #{tpu_custom_call.1} parent=5 // pred_fallthru
        _
      %p568 = scmp.le.s32.totalorder 2, %s23
      // Predicated region
      $region65: #{tpu_custom_call.1} parent=5 // pred_check
        %p569 = pneg %p568
      $region66: #{tpu_custom_call.1} parent=5 // pred_check_branch
        %571 = sbr.rel (%p569) target = $region68
      $region67: #{tpu_custom_call.1} parent=5 // pred_region
        %s572 = ssub.s32 %s23, 2
        // Predicated region
        $region69: #{tpu_custom_call.1} parent=67 // pred_check
          %p573 = pneg %p185
        $region70: #{tpu_custom_call.1} parent=67 // pred_check_branch
          %575 = sbr.rel (%p573) target = $region72
        $region71: #{tpu_custom_call.1} parent=67 // pred_region
          %s576 = sand.u32 %s170, 1
          %s577 = scalar_lea.sflag [#allocation7], %s576
          %s578 = sand.u32 %s170, 1
          %s579 = smul.addr %s578, 8
          %s580 = scalar_lea.vmem [#allocation11], %s579
          %581 = dma.done %s577, 128
        $region72: #{tpu_custom_call.1} parent=67 // pred_fallthru
          _
      $region68: #{tpu_custom_call.1} parent=5 // pred_fallthru
        _
    $region6: #{tpu_custom_call.1} parent=1 // loop_footer
      %s27 = sadd.s32 1, %s23
    $region7: #{tpu_custom_call.1} parent=1 // loop_footer_branch
      %22 = sbr.rel target = $region3
    $region8: #{tpu_custom_call.1} parent=1 // loop_exit
      _
    %582 = vsyncpa [#allocation6], 1
    %s583 = scalar_lea.sflag [#allocation6], 1
    %584 = vsyncpa %s583, 1
    %585 = vsyncpa [#allocation9], 1
    %586 = vsyncpa [#allocation7], 1
    %s587 = scalar_lea.sflag [#allocation7], 1
    %588 = vsyncpa %s587, 1

</llo_original>
